<compile_context>
chip_gen: v7x
topology: tpu7x:2x2x1
jax: 0.10.0
libtpu: 0.0.40
codegen_flags: <defaults>
</compile_context>

<pallas_src>
import math

import jax
import jax.numpy as jnp
from jax.experimental import pallas as pl
from jax.experimental.pallas import tpu as pltpu


def _flatten_copy_kernel(x_ref, o_ref):
    # Pure lane-dense tile copy; the flatten itself is a free row-major view.
    o_ref[...] = x_ref[...]


def _pick_tile(n, b, itemsize):
    """Pick a lane-dense tile width TN that divides N.

    Prefers TN a multiple of 128 (unmasked stores), a few hundred KiB per
    block, and >=2 grid steps when that is cheaply possible.  Falls back to a
    single full-array block (allowed by the BlockSpec rule: block == full dim)
    when N is not a multiple of 128.
    """
    if n % 128 != 0:
        return n  # single full block; block_shape equals full array dims.
    # Target ~512 KiB per block (per buffer), lane axis a multiple of 128.
    target_lanes = max(128, ((512 * 1024) // max(1, b * itemsize)) // 128 * 128)
    tile = min(n, target_lanes)
    while n % tile != 0:
        tile -= 128
    # Expose >=2 grid steps (DMA pipelining; 2 TCs on v7x) when possible.
    if tile == n and n >= 256:
        half = ((n // 2) // 128) * 128
        if half >= 128 and n % half == 0:
            tile = half
    return tile


@jax.jit
def flatten_pallas(x):
    """Equivalent of torch.flatten(x, 1) for contiguous row-major input."""
    if x.ndim < 2:
        raise ValueError("flatten_pallas expects an input of rank >= 2")
    b = x.shape[0]
    n = math.prod(x.shape[1:])
    # Row-major flatten of trailing dims is a zero-cost metadata reshape
    # (same as torch.flatten's view); the kernel streams the (B, N) array
    # HBM -> VMEM -> HBM with lane-dense tiles.
    x2 = x.reshape(b, n)
    tn = _pick_tile(n, b, x.dtype.itemsize)
    grid = (n // tn,)

    return pl.pallas_call(
        _flatten_copy_kernel,
        out_shape=jax.ShapeDtypeStruct((b, n), x.dtype),
        grid_spec=pltpu.PrefetchScalarGridSpec(
            num_scalar_prefetch=0,
            grid=grid,
            in_specs=[pl.BlockSpec((b, tn), lambda i: (0, i))],
            out_specs=pl.BlockSpec((b, tn), lambda i: (0, i)),
        ),
        compiler_params=pltpu.CompilerParams(
            dimension_semantics=("parallel",)),
    )(x2)


# ----------------------------- pure-JAX reference -----------------------------
def _ref_flatten(x):
    return jnp.reshape(x, (x.shape[0], -1))


# ----------------------------------- main -----------------------------------
if __name__ == "__main__":
    key = jax.random.PRNGKey(0)
    k0, k1 = jax.random.split(key, 2)

    # Case 1: classic NCHW feature map, N = 4*16*16 = 1024 (lane-dense tiles).
    x = jax.random.normal(k0, (2, 4, 16, 16), jnp.float32)
    y = flatten_pallas(x)
    jax.block_until_ready(y)
    assert y.shape == (2, 4 * 16 * 16)
    assert jnp.array_equal(y, _ref_flatten(x))

    # Case 2: N = 3*8*40 = 960 (not a multiple of 128) -> full-block fallback.
    x3 = jax.random.normal(k1, (2, 3, 8, 40), jnp.float32)
    y3 = flatten_pallas(x3)
    jax.block_until_ready(y3)
    assert y3.shape == (2, 3 * 8 * 40)
    assert jnp.array_equal(y3, _ref_flatten(x3))

    print("KERNEL_OK")
</pallas_src>

<mosaic_0001>
module attributes {stable_mosaic.version = 11 : i64} {
  func.func @_flatten_copy_kernel(%arg0: i32, %arg1: memref<2x512xf32, #tpu.memory_space<vmem>>, %arg2: memref<2x512xf32, #tpu.memory_space<vmem>>) attributes {dimension_semantics = [#tpu.dimension_semantics<parallel>], iteration_bounds = array<i64: 2>, scalar_prefetch = 0 : i64, scratch_operands = 0 : i64, tpu.core_type = #tpu.core_type<tc>, window_params = [{transform_indices = @transform_0, window_bounds = array<i64: 2, 512>}, {transform_indices = @transform_1, window_bounds = array<i64: 2, 512>}]} {
    %c0 = arith.constant 0 : index
    %c0_0 = arith.constant 0 : index
    %0 = vector.load %arg1[%c0, %c0_0] : memref<2x512xf32, #tpu.memory_space<vmem>>, vector<2x512xf32>
    %c0_1 = arith.constant 0 : index
    %c0_2 = arith.constant 0 : index
    %1 = vector.load %arg2[%c0_1, %c0_2] : memref<2x512xf32, #tpu.memory_space<vmem>>, vector<2x512xf32>
    tpu.vector_store %arg2[%c0_1, %c0_2], %0 {strides = array<i32>} : memref<2x512xf32, #tpu.memory_space<vmem>>, vector<2x512xf32>,
    return
  }
  func.func @transform_0(%arg0: i32) -> (i32, i32) {
    %c0_i32 = arith.constant 0 : i32
    %c0_i32_0 = arith.constant 0 : i32
    return %c0_i32, %arg0 : i32, i32
  }
  func.func @transform_1(%arg0: i32) -> (i32, i32) {
    %c0_i32 = arith.constant 0 : i32
    %c0_i32_0 = arith.constant 0 : i32
    return %c0_i32, %arg0 : i32, i32
  }
}

</mosaic_0001>

<llo_original>
// kernel: flatten_pallas.1
$region0: #{flatten_pallas.1}
  #allocation0 [shape = 'u32[]', space=smem, size = 0x4, offset = 0x4, fixed_abs, tag = 'smem constant byte address 0x4 - core index']
  #allocation1 [shape = 'u32[144,128]{1,0:T(1,128)}', space=vmem, size = 0x12000, scoped, tag = 'internal scratch']
  %s0 = inlined_call_operand.vmem [shape: f32[2,1024], index: 0, kind: input, shape index: {}]
  %s1 = inlined_call_operand.hbm [shape: f32[2,1024], index: 1, kind: output, shape index: {}]
  %s2 = sld [smem:[#allocation0]]
  $region37: #{flatten_pallas.1} parent=0
    _
  %s4 = ssub.s32 1, %s2
  %s5 = scalar_select 0, %s4, %s2
  $region1: #{flatten_pallas.1} parent=0
    #allocation2 [shape = 'u8[8192]{0}', space=vmem, size = 0x2000, scoped, tag = 'output window, operand 0']
    #allocation3 [shape = 's32[2]{0}', space=sflag, size = 0x8, scoped, tag = 'scoped memory for flatten_pallas.1']
    %6 = vsyncpa [#allocation3], 0
    %s7 = scalar_lea.sflag [#allocation3], 1
    %8 = vsyncpa %s7, 0
    loop: start=0, step=1, limit=4
    $region2: #{flatten_pallas.1} parent=1 // loop_pre_header
      _
    $region3: #{flatten_pallas.1} parent=1 // loop_header
      %s10 = sphi 0, %s14
      %p11 = scmp.ge.s32.totalorder %s10, 4
      %s20 = sphi 0, %s22
      %s23 = sphi 0, %s20
      %s24 = sphi 0, %s23
      %s40 = sphi 0, %s24
      %s46 = sphi 0, %s48
      %s49 = sphi 0, %s46
      %s50 = sphi 0, %s49
      %s66 = sphi 0, %s50
    $region4: #{flatten_pallas.1} parent=1 // loop_header_branch
      %13 = sbr.rel (%p11) target = $region8
    $region5: #{flatten_pallas.1} parent=1 // loop_body
      %s15 = ssub.s32 %s10, 1
      %s16 = ssub.s32 %s10, 2
      %s17 = sadd.s32 %s10, 1
      %s18 = ssub.s32 %s10, %s17
      %p19 = scmp.eq.s32.totalorder %s18, 0
      %s21 = sadd.s32 %s20, 1
      %s22 = scalar_select %p19, %s20, %s21
      %p25 = pneg %p19
      %p26 = scmp.eq.s32.totalorder %s10, 1
      %p27 = por %p25, %p26
      %p28 = scmp.ne.s32.totalorder %s20, %s23
      %p29 = scmp.eq.s32.totalorder %s10, 0
      %p30 = por %p28, %p29
      %p31 = scmp.ne.s32.totalorder %s20, %s23
      %p32 = scmp.eq.s32.totalorder %s15, 1
      %p33 = por %p31, %p32
      %p34 = scmp.ne.s32.totalorder %s23, %s24
      %p35 = scmp.eq.s32.totalorder %s15, 0
      %p36 = por %p34, %p35
      %p37 = scmp.ne.s32.totalorder %s23, %s24
      %p38 = scmp.eq.s32.totalorder %s16, 1
      %p39 = por %p37, %p38
      %p41 = scmp.ne.s32.totalorder %s24, %s40
      %p42 = scmp.eq.s32.totalorder %s16, 0
      %p43 = por %p41, %p42
      %s44 = ssub.s32 %s10, %s17
      %p45 = scmp.eq.s32.totalorder %s44, 0
      %s47 = sadd.s32 %s46, 1
      %s48 = scalar_select %p45, %s46, %s47
      %p51 = pneg %p45
      %p52 = scmp.eq.s32.totalorder %s10, 1
      %p53 = por %p51, %p52
      %p54 = scmp.ne.s32.totalorder %s46, %s49
      %p55 = scmp.eq.s32.totalorder %s10, 0
      %p56 = por %p54, %p55
      %p57 = scmp.ne.s32.totalorder %s46, %s49
      %p58 = scmp.eq.s32.totalorder %s15, 1
      %p59 = por %p57, %p58
      %p60 = scmp.ne.s32.totalorder %s49, %s50
      %p61 = scmp.eq.s32.totalorder %s15, 0
      %p62 = por %p60, %p61
      %p63 = scmp.ne.s32.totalorder %s49, %s50
      %p64 = scmp.eq.s32.totalorder %s16, 1
      %p65 = por %p63, %p64
      %p67 = scmp.ne.s32.totalorder %s50, %s66
      %p68 = scmp.eq.s32.totalorder %s16, 0
      %p69 = por %p67, %p68
      %p70 = scmp.le.s32.totalorder 1, %s10
      %p71 = scmp.lt.s32.totalorder %s10, 3
      %p72 = pnand %p70, %p71
      %p73 = pneg %p72
      // Predicated region
      $region9: #{flatten_pallas.1} parent=5 // pred_check
        _
      $region10: #{flatten_pallas.1} parent=5 // pred_check_branch
        %75 = sbr.rel (%p72) target = $region12
      $region11: #{flatten_pallas.1} parent=5 // pred_region
        %s76 = ssub.s32 %s10, 1
      $region12: #{flatten_pallas.1} parent=5 // pred_fallthru
        _
      %p77 = scmp.lt.s32.totalorder %s10, 2
      // Predicated region
      $region13: #{flatten_pallas.1} parent=5 // pred_check
        %p78 = pneg %p77
      $region14: #{flatten_pallas.1} parent=5 // pred_check_branch
        %80 = sbr.rel (%p78) target = $region16
      $region15: #{flatten_pallas.1} parent=5 // pred_region
        // Predicated region
        $region17: #{flatten_pallas.1} parent=15 // pred_check
          %p81 = pneg %p30
        $region18: #{flatten_pallas.1} parent=15 // pred_check_branch
          %83 = sbr.rel (%p81) target = $region20
        $region19: #{flatten_pallas.1} parent=15 // pred_region
          %s84 = smul.u32 4, %s10
          %p85 = scmp.lt.s32.totalorder %s84, 7
          %s86 = scalar_select %p85, %s84, 7
          %s87 = smul.addr %s86, 2
          %s88 = scalar_lea.vmem %s0, %s87
          %s89 = smul.u32 4, %s10
        $region20: #{flatten_pallas.1} parent=15 // pred_fallthru
          _
      $region16: #{flatten_pallas.1} parent=5 // pred_fallthru
        _
      %p90 = scmp.le.s32.totalorder 1, %s10
      %p91 = scmp.lt.s32.totalorder %s10, 3
      %p92 = pnand %p90, %p91
      %p93 = pneg %p92
      // Predicated region
      $region21: #{flatten_pallas.1} parent=5 // pred_check
        _
      $region22: #{flatten_pallas.1} parent=5 // pred_check_branch
        %95 = sbr.rel (%p92) target = $region24
      $region23: #{flatten_pallas.1} parent=5 // pred_region
        %s96 = ssub.s32 %s10, 1
        %s97 = smul.u32 4, %s15
        %p98 = scmp.lt.s32.totalorder %s97, 7
        %s99 = scalar_select %p98, %s97, 7
        %s100 = smul.addr %s99, 2
        %s101 = scalar_lea.vmem %s0, %s100
        %p102 = pneg %p36
        %p103 = pneg %p33
        %p104 = pneg %p62
        %p105 = pneg %p59
        %s106 = sand.u32 %s49, 1
        %s107 = scalar_lea.sflag [#allocation3], %s106
        %s108 = sand.u32 %s49, 1
        %s109 = smul.addr %s108, 8
        %s110 = scalar_lea.vmem [#allocation2], %s109
        %s111 = smul.u32 4, %s15
        %p112 = scmp.lt.s32.totalorder %s111, 7
        %s113 = scalar_select %p112, %s111, 7
        %s114 = smul.addr %s113, 2
        %s115 = scalar_lea.vmem %s0, %s114
        %s116 = smul.u32 4, %s15
        %s117 = smul.u32 4, %s15
        %v118 = vld [vmem:[%s115] sm:$0xff]
        %119 = vst [vmem:[%s110] sm:$0xff] %v118
        %s120 = sand.u32 %s49, 1
        %s121 = scalar_lea.sflag [#allocation3], %s120
        %s122 = sand.u32 %s49, 1
        %s123 = smul.addr %s122, 8
        %s124 = scalar_lea.vmem [#allocation2], %s123
        // Predicated region
        $region25: #{flatten_pallas.1} parent=23 // pred_check
          %p125 = pneg %p59
        $region26: #{flatten_pallas.1} parent=23 // pred_check_branch
          %127 = sbr.rel (%p125) target = $region28
        $region27: #{flatten_pallas.1} parent=23 // pred_region
          %s128 = smul.u32 4, %s15
          %s130 = ssub.s32 128, 128
          %131 = vsyncadd %s121, %s130
          %s132 = smul.addr %s128, 32
          %s133 = scalar_lea.hbm %s1, %s132
          %s135 = sshll.u32 %s124, 4
          %s136 = int_to_ptr.vmem [resolvable:$true] %s135
          %138 = dma.vmem_to_hbm [thread:$0]  %s136, 128, %s133, %s121
        $region28: #{flatten_pallas.1} parent=23 // pred_fallthru
          _
      $region24: #{flatten_pallas.1} parent=5 // pred_fallthru
        _
      %p139 = scmp.le.s32.totalorder 2, %s10
      // Predicated region
      $region29: #{flatten_pallas.1} parent=5 // pred_check
        %p140 = pneg %p139
      $region30: #{flatten_pallas.1} parent=5 // pred_check_branch
        %142 = sbr.rel (%p140) target = $region32
      $region31: #{flatten_pallas.1} parent=5 // pred_region
        %s143 = ssub.s32 %s10, 2
        // Predicated region
        $region33: #{flatten_pallas.1} parent=31 // pred_check
          %p144 = pneg %p65
        $region34: #{flatten_pallas.1} parent=31 // pred_check_branch
          %146 = sbr.rel (%p144) target = $region36
        $region35: #{flatten_pallas.1} parent=31 // pred_region
          %s147 = sand.u32 %s50, 1
          %s148 = scalar_lea.sflag [#allocation3], %s147
          %s149 = sand.u32 %s50, 1
          %s150 = smul.addr %s149, 8
          %s151 = scalar_lea.vmem [#allocation2], %s150
          %152 = dma.done %s148, 128
        $region36: #{flatten_pallas.1} parent=31 // pred_fallthru
          _
      $region32: #{flatten_pallas.1} parent=5 // pred_fallthru
        _
    $region6: #{flatten_pallas.1} parent=1 // loop_footer
      %s14 = sadd.s32 1, %s10
    $region7: #{flatten_pallas.1} parent=1 // loop_footer_branch
      %9 = sbr.rel target = $region3
    $region8: #{flatten_pallas.1} parent=1 // loop_exit
      _
    %153 = vsyncpa [#allocation3], 1
    %s154 = scalar_lea.sflag [#allocation3], 1
    %155 = vsyncpa %s154, 1

</llo_original>
